<compile_context>
chip_gen: v7x
topology: tpu7x:2x2x1
jax: 0.10.0
libtpu: 0.0.40
codegen_flags: <defaults>
</compile_context>

<pallas_src>
import functools
import math

import jax
import jax.numpy as jnp
from jax import lax
from jax.experimental import pallas as pl
from jax.experimental.pallas import tpu as pltpu


def _round_up(x, m):
    return ((x + m - 1) // m) * m


def _gcn_agg_kernel(*refs, apply_weight, apply_relu):
    if apply_weight:
        a_t_ref, m_ref, w_ref, norm2_ref, b_ref, o_ref, acc_ref = refs
    else:
        a_t_ref, m_ref, norm2_ref, b_ref, o_ref, acc_ref = refs
        w_ref = None

    k = pl.program_id(1)

    @pl.when(k == 0)
    def _init():
        acc_ref[...] = jnp.zeros_like(acc_ref)

    # Aggregation: acc[dst, :] += sum_src A_T[dst, src] * msg[src, :]
    acc_ref[...] += jnp.dot(
        a_t_ref[...], m_ref[...], preferred_element_type=jnp.float32
    )

    @pl.when(k == pl.num_programs(1) - 1)
    def _finalize():
        rst = acc_ref[...]
        if apply_weight:
            # Small per-tile feature transform (TM x Fm) @ (Fm x Fo), f32.
            rst = jnp.dot(rst, w_ref[...], preferred_element_type=jnp.float32)
        rst = rst * norm2_ref[...] + b_ref[...]
        if apply_relu:
            rst = jnp.maximum(rst, 0.0)
        o_ref[...] = rst.astype(o_ref.dtype)


def gcn_forward(adj, features, weight, bias, activation_relu=False, *,
                compute_dtype=jnp.bfloat16, tm=256, tk=512):
    """adj: [N, N] adjacency with adj[src, dst] = 1; features: [N, F_in]."""
    n, f_in = features.shape
    f_out = weight.shape[1]

    # --- Degree normalization & small feature transform (XLA, outside kernel).
    adj32 = adj.astype(jnp.float32)
    x32 = features.astype(jnp.float32)
    w32 = weight.astype(jnp.float32)
    out_deg = jnp.maximum(jnp.sum(adj32, axis=1, keepdims=True), 1.0)   # [N, 1]
    in_deg = jnp.maximum(jnp.sum(adj32, axis=0), 1.0)[:, None]          # [N, 1]
    norm1 = lax.rsqrt(out_deg)
    norm2 = lax.rsqrt(in_deg)

    # Contract the N^2 aggregation over min(F_in, F_out).
    apply_weight = f_in <= f_out
    if apply_weight:
        msg = x32 * norm1                      # [N, F_in]
    else:
        msg = (x32 * norm1) @ w32              # [N, F_out]
    f_msg = msg.shape[1]

    # --- Padding: feature dims -> multiples of 128 (lane-dense), nodes -> grid.
    tm = min(tm, _round_up(n, 128))
    tk = min(tk, _round_up(n, 128))
    n_pad = _round_up(n, math.lcm(tm, tk))
    fm_pad = _round_up(f_msg, 128)
    fo_pad = _round_up(f_out, 128)

    a_t = jnp.pad(adj32.T, ((0, n_pad - n), (0, n_pad - n))).astype(compute_dtype)
    msg_p = jnp.pad(msg, ((0, n_pad - n), (0, fm_pad - f_msg))).astype(compute_dtype)
    norm2_p = jnp.pad(norm2, ((0, n_pad - n), (0, 0)), constant_values=1.0)
    bias_p = jnp.pad(bias.reshape(1, f_out).astype(jnp.float32),
                     ((0, 0), (0, fo_pad - f_out)))

    operands = [a_t, msg_p]
    in_specs = [
        pl.BlockSpec((tm, tk), lambda i, k: (i, k)),       # A^T tile (dst, src)
        pl.BlockSpec((tk, fm_pad), lambda i, k: (k, 0)),   # message src tile
    ]
    if apply_weight:
        w_p = jnp.pad(w32, ((0, fm_pad - f_in), (0, fo_pad - f_out)))
        operands.append(w_p)
        in_specs.append(pl.BlockSpec((fm_pad, fo_pad), lambda i, k: (0, 0)))
    operands += [norm2_p, bias_p]
    in_specs += [
        pl.BlockSpec((tm, 1), lambda i, k: (i, 0)),        # norm2 (per dst row)
        pl.BlockSpec((1, fo_pad), lambda i, k: (0, 0)),    # bias
    ]

    grid = (n_pad // tm, n_pad // tk)

    # VMEM budget: double-buffered A / msg / out tiles + f32 accumulator + params.
    csize = jnp.dtype(compute_dtype).itemsize
    vmem_bytes = (2 * tm * tk * csize          # A^T tiles (double-buffered)
                  + 2 * tk * fm_pad * csize    # msg tiles (double-buffered)
                  + 2 * tm * fo_pad * 4        # output tiles
                  + tm * fm_pad * 4            # accumulator
                  + fm_pad * fo_pad * 4        # weight
                  + tm * 4 + fo_pad * 4)       # norm2 + bias
    vmem_limit = int(min(max(2 * vmem_bytes, 16 << 20), 64 << 20))

    kernel = functools.partial(_gcn_agg_kernel,
                               apply_weight=apply_weight,
                               apply_relu=activation_relu)
    out_p = pl.pallas_call(
        kernel,
        grid=grid,
        in_specs=in_specs,
        out_specs=pl.BlockSpec((tm, fo_pad), lambda i, k: (i, 0)),
        out_shape=jax.ShapeDtypeStruct((n_pad, fo_pad), features.dtype),
        scratch_shapes=[pltpu.VMEM((tm, fm_pad), jnp.float32)],
        compiler_params=pltpu.CompilerParams(
            dimension_semantics=("parallel", "arbitrary"),
            vmem_limit_bytes=vmem_limit,
        ),
    )(*operands)

    return out_p[:n, :f_out]


def gcn_reference(adj, features, weight, bias, activation_relu=False):
    """Pure-JAX f32 reference mirroring the PyTorch module."""
    out_deg = jnp.maximum(adj.sum(axis=1), 1.0)[:, None]
    h = (features * out_deg ** -0.5) @ weight
    rst = adj.T @ h
    in_deg = jnp.maximum(adj.sum(axis=0), 1.0)[:, None]
    rst = rst * in_deg ** -0.5 + bias[None, :]
    if activation_relu:
        rst = jnp.maximum(rst, 0.0)
    return rst


if __name__ == "__main__":
    # Small, deterministic problem: 16 nodes, in_feats=8, out_feats=32.
    num_nodes, in_feats, out_feats = 16, 8, 32
    key = jax.random.PRNGKey(0)
    k_adj, k_x, k_w = jax.random.split(key, 3)

    # Deterministic random directed graph (dense adjacency, A[src, dst]).
    adj = jax.random.bernoulli(k_adj, 0.3, (num_nodes, num_nodes)).astype(jnp.float32)
    features = jax.random.normal(k_x, (num_nodes, in_feats), dtype=jnp.float32)

    # Parameters: Xavier/Glorot uniform weight, zero bias (as in reset_parameters).
    bound = (6.0 / (in_feats + out_feats)) ** 0.5
    weight = jax.random.uniform(k_w, (in_feats, out_feats), dtype=jnp.float32,
                                minval=-bound, maxval=bound)
    bias = jnp.zeros((out_feats,), dtype=jnp.float32)

    ref = gcn_reference(adj, features, weight, bias, activation_relu=True)

    # Full-precision path: must match the reference tightly.
    out_f32 = gcn_forward(adj, features, weight, bias, activation_relu=True,
                          compute_dtype=jnp.float32)
    out_f32 = jax.block_until_ready(out_f32)
    assert out_f32.shape == (num_nodes, out_feats)
    assert jnp.allclose(out_f32, ref, atol=1e-4, rtol=1e-4), "f32 mismatch vs reference"

    # Default bf16-streaming path (halves A's HBM traffic): looser tolerance.
    out_bf16 = gcn_forward(adj, features, weight, bias, activation_relu=True)
    out_bf16 = jax.block_until_ready(out_bf16)
    assert out_bf16.shape == (num_nodes, out_feats)
    assert jnp.allclose(out_bf16, ref, atol=5e-2, rtol=5e-2), "bf16 mismatch vs reference"

    print("KERNEL_OK")
</pallas_src>

<mosaic_0001>
module attributes {stable_mosaic.version = 11 : i64} {
  func.func @_gcn_agg_kernel(%arg0: i32, %arg1: i32, %arg2: memref<128x128xf32, #tpu.memory_space<vmem>>, %arg3: memref<128x128xf32, #tpu.memory_space<vmem>>, %arg4: memref<128x128xf32, #tpu.memory_space<vmem>>, %arg5: memref<128x1xf32, #tpu.memory_space<vmem>>, %arg6: memref<1x128xf32, #tpu.memory_space<vmem>>, %arg7: memref<128x128xf32, #tpu.memory_space<vmem>>, %arg8: memref<128x128xf32, #tpu.memory_space<vmem>>) attributes {dimension_semantics = [#tpu.dimension_semantics<parallel>, #tpu.dimension_semantics<arbitrary>], iteration_bounds = array<i64: 1, 1>, scalar_prefetch = 0 : i64, scratch_operands = 1 : i64, tpu.core_type = #tpu.core_type<tc>, window_params = [{transform_indices = @transform_0, window_bounds = array<i64: 128, 128>}, {transform_indices = @transform_1, window_bounds = array<i64: 128, 128>}, {pipeline_mode = #tpu.pipeline_mode<synchronous>, transform_indices = @transform_2, window_bounds = array<i64: 128, 128>}, {transform_indices = @transform_3, window_bounds = array<i64: 128, 1>}, {pipeline_mode = #tpu.pipeline_mode<synchronous>, transform_indices = @transform_4, window_bounds = array<i64: 1, 128>}, {transform_indices = @transform_5, window_bounds = array<i64: 128, 128>}]} {
    %c0_i32 = arith.constant 0 : i32
    %0 = arith.cmpi eq, %arg1, %c0_i32 : i32
    %1 = arith.extui %0 : i1 to i32
    %c0_i32_0 = arith.constant 0 : i32
    %2 = arith.cmpi ne, %1, %c0_i32_0 : i32
    scf.if %2 {
      %cst_10 = arith.constant 0.000000e+00 : f32
      %12 = vector.broadcast %cst_10 : f32 to vector<128x128xf32>
      %c0_11 = arith.constant 0 : index
      %c0_12 = arith.constant 0 : index
      %13 = vector.load %arg8[%c0_11, %c0_12] : memref<128x128xf32, #tpu.memory_space<vmem>>, vector<128x128xf32>
      tpu.vector_store %arg8[%c0_11, %c0_12], %12 {strides = array<i32>} : memref<128x128xf32, #tpu.memory_space<vmem>>, vector<128x128xf32>,
    } else {
    }
    %c0 = arith.constant 0 : index
    %c0_1 = arith.constant 0 : index
    %3 = vector.load %arg8[%c0, %c0_1] : memref<128x128xf32, #tpu.memory_space<vmem>>, vector<128x128xf32>
    %c0_2 = arith.constant 0 : index
    %c0_3 = arith.constant 0 : index
    %4 = vector.load %arg2[%c0_2, %c0_3] : memref<128x128xf32, #tpu.memory_space<vmem>>, vector<128x128xf32>
    %c0_4 = arith.constant 0 : index
    %c0_5 = arith.constant 0 : index
    %5 = vector.load %arg3[%c0_4, %c0_5] : memref<128x128xf32, #tpu.memory_space<vmem>>, vector<128x128xf32>
    %cst = arith.constant dense<0.000000e+00> : vector<128x128xf32>
    %6 = tpu.matmul %4, %5, %cst {dimension_numbers = #tpu.dot_dimension_numbers<[1], [0], [0], [1], [0, 0, 1, 1], [], []>} : vector<128x128xf32>, vector<128x128xf32>, vector<128x128xf32> -> vector<128x128xf32>
    %7 = arith.addf %3, %6 : vector<128x128xf32>
    %c0_6 = arith.constant 0 : index
    %c0_7 = arith.constant 0 : index
    %8 = vector.load %arg8[%c0_6, %c0_7] : memref<128x128xf32, #tpu.memory_space<vmem>>, vector<128x128xf32>
    tpu.vector_store %arg8[%c0_6, %c0_7], %7 {strides = array<i32>} : memref<128x128xf32, #tpu.memory_space<vmem>>, vector<128x128xf32>,
    %c0_i32_8 = arith.constant 0 : i32
    %9 = arith.cmpi eq, %arg1, %c0_i32_8 : i32
    %10 = arith.extui %9 : i1 to i32
    %c0_i32_9 = arith.constant 0 : i32
    %11 = arith.cmpi ne, %10, %c0_i32_9 : i32
    scf.if %11 {
      %c0_10 = arith.constant 0 : index
      %c0_11 = arith.constant 0 : index
      %12 = vector.load %arg8[%c0_10, %c0_11] : memref<128x128xf32, #tpu.memory_space<vmem>>, vector<128x128xf32>
      %c0_12 = arith.constant 0 : index
      %c0_13 = arith.constant 0 : index
      %13 = vector.load %arg4[%c0_12, %c0_13] : memref<128x128xf32, #tpu.memory_space<vmem>>, vector<128x128xf32>
      %cst_14 = arith.constant dense<0.000000e+00> : vector<128x128xf32>
      %14 = tpu.matmul %12, %13, %cst_14 {dimension_numbers = #tpu.dot_dimension_numbers<[1], [0], [0], [1], [0, 0, 1, 1], [], []>} : vector<128x128xf32>, vector<128x128xf32>, vector<128x128xf32> -> vector<128x128xf32>
      %c0_15 = arith.constant 0 : index
      %c0_16 = arith.constant 0 : index
      %15 = vector.load %arg5[%c0_15, %c0_16] : memref<128x1xf32, #tpu.memory_space<vmem>>, vector<128x1xf32>
      %16 = vector.broadcast %15 : vector<128x1xf32> to vector<128x128xf32>
      %17 = arith.mulf %14, %16 : vector<128x128xf32>
      %c0_17 = arith.constant 0 : index
      %c0_18 = arith.constant 0 : index
      %18 = vector.load %arg6[%c0_17, %c0_18] : memref<1x128xf32, #tpu.memory_space<vmem>>, vector<1x128xf32>
      %19 = vector.broadcast %18 : vector<1x128xf32> to vector<128x128xf32>
      %20 = arith.addf %17, %19 : vector<128x128xf32>
      %cst_19 = arith.constant 0.000000e+00 : f32
      %21 = vector.broadcast %cst_19 : f32 to vector<128x128xf32>
      %22 = arith.maximumf %20, %21 : vector<128x128xf32>
      %c0_20 = arith.constant 0 : index
      %c0_21 = arith.constant 0 : index
      %23 = vector.load %arg7[%c0_20, %c0_21] : memref<128x128xf32, #tpu.memory_space<vmem>>, vector<128x128xf32>
      tpu.vector_store %arg7[%c0_20, %c0_21], %22 {strides = array<i32>} : memref<128x128xf32, #tpu.memory_space<vmem>>, vector<128x128xf32>,
    } else {
    }
    return
  }
  func.func @transform_0(%arg0: i32, %arg1: i32) -> (i32, i32) {
    %c0_i32 = arith.constant 0 : i32
    return %arg0, %arg1 : i32, i32
  }
  func.func @transform_1(%arg0: i32, %arg1: i32) -> (i32, i32) {
    %c0_i32 = arith.constant 0 : i32
    %c0_i32_0 = arith.constant 0 : i32
    return %arg1, %c0_i32 : i32, i32
  }
  func.func @transform_2(%arg0: i32, %arg1: i32) -> (i32, i32) {
    %c0_i32 = arith.constant 0 : i32
    %c0_i32_0 = arith.constant 0 : i32
    %c0_i32_1 = arith.constant 0 : i32
    return %c0_i32, %c0_i32_0 : i32, i32
  }
  func.func @transform_3(%arg0: i32, %arg1: i32) -> (i32, i32) {
    %c0_i32 = arith.constant 0 : i32
    %c0_i32_0 = arith.constant 0 : i32
    return %arg0, %c0_i32 : i32, i32
  }
  func.func @transform_4(%arg0: i32, %arg1: i32) -> (i32, i32) {
    %c0_i32 = arith.constant 0 : i32
    %c0_i32_0 = arith.constant 0 : i32
    %c0_i32_1 = arith.constant 0 : i32
    return %c0_i32, %c0_i32_0 : i32, i32
  }
  func.func @transform_5(%arg0: i32, %arg1: i32) -> (i32, i32) {
    %c0_i32 = arith.constant 0 : i32
    %c0_i32_0 = arith.constant 0 : i32
    return %arg0, %c0_i32 : i32, i32
  }
}

</mosaic_0001>

<llo_original>
// kernel: tpu_custom_call.1
$region0: #{tpu_custom_call.1}
  #allocation0 [shape = 'u32[]', space=smem, size = 0x4, offset = 0x4, fixed_abs, tag = 'smem constant byte address 0x4 - core index']
  #allocation1 [shape = 'u32[144,128]{1,0:T(1,128)}', space=vmem, size = 0x12000, scoped, tag = 'internal scratch']
  #allocation2 [shape = 'f32[128,128]{1,0:T(8,128)}', space=vmem, size = 0x10000, scoped, tag = 'scratch operand']
  %s0 = inlined_call_operand.vmem [shape: f32[128,128], index: 0, kind: input, shape index: {}]
  %s1 = inlined_call_operand.hbm [shape: f32[128,128], index: 1, kind: input, shape index: {}]
  %s2 = inlined_call_operand.hbm [shape: f32[128,128], index: 2, kind: input, shape index: {}]
  %s3 = inlined_call_operand.vmem [shape: f32[128,1], index: 3, kind: input, shape index: {}]
  %s4 = inlined_call_operand.vmem [shape: f32[1,128], index: 4, kind: input, shape index: {}]
  %s5 = inlined_call_operand.hbm [shape: f32[128,128], index: 5, kind: output, shape index: {}]
  %s6 = sld [smem:[#allocation0]]
  $region46: #{tpu_custom_call.1} parent=0
    _
  %s8 = ssub.s32 1, %s6
  %s9 = scalar_select 0, %s8, %s6
  $region1: #{tpu_custom_call.1} parent=0
    #allocation3 [shape = 'u8[65536]{0}', space=vmem, size = 0x10000, scoped, tag = 'input window, operand 1, single buffered']
    #allocation4 [shape = 's32[1]{0}', space=sflag, size = 0x4, scoped, tag = 'scoped memory for tpu_custom_call.1']
    #allocation5 [shape = 's32[1]{0}', space=sflag, size = 0x4, scoped, tag = 'scoped memory for tpu_custom_call.1']
    #allocation6 [shape = 'u8[65536]{0}', space=vmem, size = 0x10000, scoped, tag = 'input window, operand 2, single buffered']
    #allocation7 [shape = 's32[1]{0}', space=sflag, size = 0x4, scoped, tag = 'scoped memory for tpu_custom_call.1']
    #allocation8 [shape = 'u8[65536]{0}', space=vmem, size = 0x10000, scoped, tag = 'output window, operand 0, single buffered']
    %10 = vsyncpa [#allocation4], 0
    %11 = vsyncpa [#allocation7], 0
    %12 = vsyncpa [#allocation5], 0
    // Predicated region
    $region2: #{tpu_custom_call.1} parent=1 // pred_check
      _
    $region3: #{tpu_custom_call.1} parent=1 // pred_check_branch
      %14 = sbr.rel (0) target = $region5
    $region4: #{tpu_custom_call.1} parent=1 // pred_region
      _
    $region5: #{tpu_custom_call.1} parent=1 // pred_fallthru
      _
    // Predicated region
    $region6: #{tpu_custom_call.1} parent=1 // pred_check
      _
    $region7: #{tpu_custom_call.1} parent=1 // pred_check_branch
      %16 = sbr.rel (0) target = $region9
    $region8: #{tpu_custom_call.1} parent=1 // pred_region
      %s18 = ssub.s32 2048, 2048
      %19 = vsyncadd [#allocation4], %s18
      %s20 = sshll.u32 [#allocation3], 4
      %s21 = int_to_ptr.vmem [resolvable:$true] %s20
      %26 = dma.hbm_to_vmem [thread:$0]  %s1, 2048, %s21, [#allocation4], 128, 128, 8
    $region9: #{tpu_custom_call.1} parent=1 // pred_fallthru
      _
    // Predicated region
    $region10: #{tpu_custom_call.1} parent=1 // pred_check
      _
    $region11: #{tpu_custom_call.1} parent=1 // pred_check_branch
      %28 = sbr.rel (0) target = $region13
    $region12: #{tpu_custom_call.1} parent=1 // pred_region
      %s30 = ssub.s32 2048, 2048
      %31 = vsyncadd [#allocation7], %s30
      %s32 = sshll.u32 [#allocation6], 4
      %s33 = int_to_ptr.vmem [resolvable:$true] %s32
      %38 = dma.hbm_to_vmem [thread:$0]  %s2, 2048, %s33, [#allocation7], 128, 128, 8
    $region13: #{tpu_custom_call.1} parent=1 // pred_fallthru
      _
    // Predicated region
    $region14: #{tpu_custom_call.1} parent=1 // pred_check
      _
    $region15: #{tpu_custom_call.1} parent=1 // pred_check_branch
      %40 = sbr.rel (0) target = $region17
    $region16: #{tpu_custom_call.1} parent=1 // pred_region
      _
    $region17: #{tpu_custom_call.1} parent=1 // pred_fallthru
      _
    // Predicated region
    $region18: #{tpu_custom_call.1} parent=1 // pred_check
      _
    $region19: #{tpu_custom_call.1} parent=1 // pred_check_branch
      %42 = sbr.rel (0) target = $region21
    $region20: #{tpu_custom_call.1} parent=1 // pred_region
      _
    $region21: #{tpu_custom_call.1} parent=1 // pred_fallthru
      _
    // Predicated region
    $region22: #{tpu_custom_call.1} parent=1 // pred_check
      _
    $region23: #{tpu_custom_call.1} parent=1 // pred_check_branch
      %44 = sbr.rel (0) target = $region25
    $region24: #{tpu_custom_call.1} parent=1 // pred_region
      %45 = dma.done [#allocation4], 2048
    $region25: #{tpu_custom_call.1} parent=1 // pred_fallthru
      _
    // Predicated region
    $region26: #{tpu_custom_call.1} parent=1 // pred_check
      _
    $region27: #{tpu_custom_call.1} parent=1 // pred_check_branch
      %47 = sbr.rel (0) target = $region29
    $region28: #{tpu_custom_call.1} parent=1 // pred_region
      %48 = dma.done [#allocation7], 2048
    $region29: #{tpu_custom_call.1} parent=1 // pred_fallthru
      _
    %p49 = scmp.eq.s32.totalorder 0, 0
    // Predicated region
    $region30: #{tpu_custom_call.1} parent=1 // pred_check
      %p50 = pneg %p49
    $region31: #{tpu_custom_call.1} parent=1 // pred_check_branch
      %52 = sbr.rel (%p50) target = $region33
    $region32: #{tpu_custom_call.1} parent=1 // pred_region
      %53 = vst [vmem:[#allocation2] sm:$0xff] 0.0
      %54 = vst [vmem:[#allocation2 + $0x8] sm:$0xff] 0.0
      %55 = vst [vmem:[#allocation2 + $0x10] sm:$0xff] 0.0
      %56 = vst [vmem:[#allocation2 + $0x18] sm:$0xff] 0.0
      %57 = vst [vmem:[#allocation2 + $0x20] sm:$0xff] 0.0
      %58 = vst [vmem:[#allocation2 + $0x28] sm:$0xff] 0.0
      %59 = vst [vmem:[#allocation2 + $0x30] sm:$0xff] 0.0
      %60 = vst [vmem:[#allocation2 + $0x38] sm:$0xff] 0.0
      %61 = vst [vmem:[#allocation2 + $0x40] sm:$0xff] 0.0
      %62 = vst [vmem:[#allocation2 + $0x48] sm:$0xff] 0.0
      %63 = vst [vmem:[#allocation2 + $0x50] sm:$0xff] 0.0
      %64 = vst [vmem:[#allocation2 + $0x58] sm:$0xff] 0.0
      %65 = vst [vmem:[#allocation2 + $0x60] sm:$0xff] 0.0
      %66 = vst [vmem:[#allocation2 + $0x68] sm:$0xff] 0.0
      %67 = vst [vmem:[#allocation2 + $0x70] sm:$0xff] 0.0
      %68 = vst [vmem:[#allocation2 + $0x78] sm:$0xff] 0.0
    $region33: #{tpu_custom_call.1} parent=1 // pred_fallthru
      _
    %v69 = vld [vmem:[#allocation2] sm:$0xff]
    %v70 = vld [vmem:[#allocation2 + $0x8] sm:$0xff]
    %v71 = vld [vmem:[#allocation2 + $0x10] sm:$0xff]
    %v72 = vld [vmem:[#allocation2 + $0x18] sm:$0xff]
    %v73 = vld [vmem:[#allocation2 + $0x20] sm:$0xff]
    %v74 = vld [vmem:[#allocation2 + $0x28] sm:$0xff]
    %v75 = vld [vmem:[#allocation2 + $0x30] sm:$0xff]
    %v76 = vld [vmem:[#allocation2 + $0x38] sm:$0xff]
    %v77 = vld [vmem:[#allocation2 + $0x40] sm:$0xff]
    %v78 = vld [vmem:[#allocation2 + $0x48] sm:$0xff]
    %v79 = vld [vmem:[#allocation2 + $0x50] sm:$0xff]
    %v80 = vld [vmem:[#allocation2 + $0x58] sm:$0xff]
    %v81 = vld [vmem:[#allocation2 + $0x60] sm:$0xff]
    %v82 = vld [vmem:[#allocation2 + $0x68] sm:$0xff]
    %v83 = vld [vmem:[#allocation2 + $0x70] sm:$0xff]
    %v84 = vld [vmem:[#allocation2 + $0x78] sm:$0xff]
    %v85 = vld [vmem:[%s0] sm:$0xff]
    %v86 = vld [vmem:[%s0 + $0x8] sm:$0xff]
    %v87 = vld [vmem:[%s0 + $0x10] sm:$0xff]
    %v88 = vld [vmem:[%s0 + $0x18] sm:$0xff]
    %v89 = vld [vmem:[%s0 + $0x20] sm:$0xff]
    %v90 = vld [vmem:[%s0 + $0x28] sm:$0xff]
    %v91 = vld [vmem:[%s0 + $0x30] sm:$0xff]
    %v92 = vld [vmem:[%s0 + $0x38] sm:$0xff]
    %v93 = vld [vmem:[%s0 + $0x40] sm:$0xff]
    %v94 = vld [vmem:[%s0 + $0x48] sm:$0xff]
    %v95 = vld [vmem:[%s0 + $0x50] sm:$0xff]
    %v96 = vld [vmem:[%s0 + $0x58] sm:$0xff]
    %v97 = vld [vmem:[%s0 + $0x60] sm:$0xff]
    %v98 = vld [vmem:[%s0 + $0x68] sm:$0xff]
    %v99 = vld [vmem:[%s0 + $0x70] sm:$0xff]
    %v100 = vld [vmem:[%s0 + $0x78] sm:$0xff]
    %v101 = vld [vmem:[#allocation3] sm:$0xff]
    %v102 = vld [vmem:[#allocation3 + $0x8] sm:$0xff]
    %v103 = vld [vmem:[#allocation3 + $0x10] sm:$0xff]
    %v104 = vld [vmem:[#allocation3 + $0x18] sm:$0xff]
    %v105 = vld [vmem:[#allocation3 + $0x20] sm:$0xff]
    %v106 = vld [vmem:[#allocation3 + $0x28] sm:$0xff]
    %v107 = vld [vmem:[#allocation3 + $0x30] sm:$0xff]
    %v108 = vld [vmem:[#allocation3 + $0x38] sm:$0xff]
    %v109 = vld [vmem:[#allocation3 + $0x40] sm:$0xff]
    %v110 = vld [vmem:[#allocation3 + $0x48] sm:$0xff]
    %v111 = vld [vmem:[#allocation3 + $0x50] sm:$0xff]
    %v112 = vld [vmem:[#allocation3 + $0x58] sm:$0xff]
    %v113 = vld [vmem:[#allocation3 + $0x60] sm:$0xff]
    %v114 = vld [vmem:[#allocation3 + $0x68] sm:$0xff]
    %v115 = vld [vmem:[#allocation3 + $0x70] sm:$0xff]
    %v116 = vld [vmem:[#allocation3 + $0x78] sm:$0xff]
    %117 = vmatprep.subr.mxu0 0.0
    %118 = vmatpush1.msra.mxu0 %v101
    %119 = vmatprep.subr.mxu0 0.0
    %120 = vmatpush1.msra.mxu0 %v102
    %121 = vmatprep.subr.mxu0 0.0
    %122 = vmatpush1.msra.mxu0 %v103
    %123 = vmatprep.subr.mxu0 0.0
    %124 = vmatpush1.msra.mxu0 %v104
    %125 = vmatprep.subr.mxu0 0.0
    %126 = vmatpush1.msra.mxu0 %v105
    %127 = vmatprep.subr.mxu0 0.0
    %128 = vmatpush1.msra.mxu0 %v106
    %129 = vmatprep.subr.mxu0 0.0
    %130 = vmatpush1.msra.mxu0 %v107
    %131 = vmatprep.subr.mxu0 0.0
    %132 = vmatpush1.msra.mxu0 %v108
    %133 = vmatprep.subr.mxu0 0.0
    %134 = vmatpush1.msra.mxu0 %v109
    %135 = vmatprep.subr.mxu0 0.0
    %136 = vmatpush1.msra.mxu0 %v110
    %137 = vmatprep.subr.mxu0 0.0
    %138 = vmatpush1.msra.mxu0 %v111
    %139 = vmatprep.subr.mxu0 0.0
    %140 = vmatpush1.msra.mxu0 %v112
    %141 = vmatprep.subr.mxu0 0.0
    %142 = vmatpush1.msra.mxu0 %v113
    %143 = vmatprep.subr.mxu0 0.0
    %144 = vmatpush1.msra.mxu0 %v114
    %145 = vmatprep.subr.mxu0 0.0
    %146 = vmatpush1.msra.mxu0 %v115
    %147 = vmatprep.subr.mxu0 0.0
    %148 = vmatpush1.msra.mxu0 %v116
    %149 = vmatprep.subr.mxu0 0.0
    %150 = vmatpush1.msra.mxu0 0.0
    %151 = vmatprep.subr.mxu0 0.0
    %152 = vmatpush1.msra.mxu0 0.0
    %153 = vmatprep.subr.mxu0 0.0
    %154 = vmatpush1.msra.mxu0 0.0
    %155 = vmatprep.subr.mxu0 0.0
    %156 = vmatpush1.msra.mxu0 0.0
    %157 = vmatprep.subr.mxu0 0.0
    %158 = vmatpush1.msra.mxu0 0.0
    %159 = vmatprep.subr.mxu0 0.0
    %160 = vmatpush1.msra.mxu0 0.0
    %161 = vmatprep.subr.mxu0 0.0
    %162 = vmatpush1.msra.mxu0 0.0
    %163 = vmatprep.subr.mxu0 0.0
    %164 = vmatpush1.msra.mxu0 0.0
    %165 = vmatprep.subr.mxu0 0.0
    %166 = vmatpush1.msra.mxu0 0.0
    %167 = vmatprep.subr.mxu0 0.0
    %168 = vmatpush1.msra.mxu0 0.0
    %169 = vmatprep.subr.mxu0 0.0
    %170 = vmatpush1.msra.mxu0 0.0
    %171 = vmatprep.subr.mxu0 0.0
    %172 = vmatpush1.msra.mxu0 0.0
    %173 = vmatprep.subr.mxu0 0.0
    %174 = vmatpush1.msra.mxu0 0.0
    %175 = vmatprep.subr.mxu0 0.0
    %176 = vmatpush1.msra.mxu0 0.0
    %177 = vmatprep.subr.mxu0 0.0
    %178 = vmatpush1.msra.mxu0 0.0
    %179 = vmatprep.subr.mxu0 0.0
    %180 = vmatpush1.msra.mxu0 0.0
    %181 = vmatprep.mubr.f32.mxu0 0.0
    %182 = vmatmul.mubr.f32.gmra.mrb[0].mxu0 %v85
    %v183 = vpop.f32.mrb[0].mxu0
    %v184 = vadd.f32 0.0, %v183
    %v185 = vpop.f32.mrb[0].mxu0
    %186 = vmatprep.mubr.f32.mxu0 0.0
    %187 = vmatmul.mubr.f32.gmra.mrb[0].mxu0 %v86
    %v188 = vpop.f32.mrb[0].mxu0
    %v189 = vadd.f32 0.0, %v188
    %v190 = vpop.f32.mrb[0].mxu0
    %191 = vmatprep.mubr.f32.mxu0 0.0
    %192 = vmatmul.mubr.f32.gmra.mrb[0].mxu0 %v87
    %v193 = vpop.f32.mrb[0].mxu0
    %v194 = vadd.f32 0.0, %v193
    %v195 = vpop.f32.mrb[0].mxu0
    %196 = vmatprep.mubr.f32.mxu0 0.0
    %197 = vmatmul.mubr.f32.gmra.mrb[0].mxu0 %v88
    %v198 = vpop.f32.mrb[0].mxu0
    %v199 = vadd.f32 0.0, %v198
    %v200 = vpop.f32.mrb[0].mxu0
    %201 = vmatprep.mubr.f32.mxu0 0.0
    %202 = vmatmul.mubr.f32.gmra.mrb[0].mxu0 %v89
    %v203 = vpop.f32.mrb[0].mxu0
    %v204 = vadd.f32 0.0, %v203
    %v205 = vpop.f32.mrb[0].mxu0
    %206 = vmatprep.mubr.f32.mxu0 0.0
    %207 = vmatmul.mubr.f32.gmra.mrb[0].mxu0 %v90
    %v208 = vpop.f32.mrb[0].mxu0
    %v209 = vadd.f32 0.0, %v208
    %v210 = vpop.f32.mrb[0].mxu0
    %211 = vmatprep.mubr.f32.mxu0 0.0
    %212 = vmatmul.mubr.f32.gmra.mrb[0].mxu0 %v91
    %v213 = vpop.f32.mrb[0].mxu0
    %v214 = vadd.f32 0.0, %v213
    %v215 = vpop.f32.mrb[0].mxu0
    %216 = vmatprep.mubr.f32.mxu0 0.0
    %217 = vmatmul.mubr.f32.gmra.mrb[0].mxu0 %v92
    %v218 = vpop.f32.mrb[0].mxu0
    %v219 = vadd.f32 0.0, %v218
    %v220 = vpop.f32.mrb[0].mxu0
    %221 = vmatprep.mubr.f32.mxu0 0.0
    %222 = vmatmul.mubr.f32.gmra.mrb[0].mxu0 %v93
    %v223 = vpop.f32.mrb[0].mxu0
    %v224 = vadd.f32 0.0, %v223
    %v225 = vpop.f32.mrb[0].mxu0
    %226 = vmatprep.mubr.f32.mxu0 0.0
    %227 = vmatmul.mubr.f32.gmra.mrb[0].mxu0 %v94
    %v228 = vpop.f32.mrb[0].mxu0
    %v229 = vadd.f32 0.0, %v228
    %v230 = vpop.f32.mrb[0].mxu0
    %231 = vmatprep.mubr.f32.mxu0 0.0
    %232 = vmatmul.mubr.f32.gmra.mrb[0].mxu0 %v95
    %v233 = vpop.f32.mrb[0].mxu0
    %v234 = vadd.f32 0.0, %v233
    %v235 = vpop.f32.mrb[0].mxu0
    %236 = vmatprep.mubr.f32.mxu0 0.0
    %237 = vmatmul.mubr.f32.gmra.mrb[0].mxu0 %v96
    %v238 = vpop.f32.mrb[0].mxu0
    %v239 = vadd.f32 0.0, %v238
    %v240 = vpop.f32.mrb[0].mxu0
    %241 = vmatprep.mubr.f32.mxu0 0.0
    %242 = vmatmul.mubr.f32.gmra.mrb[0].mxu0 %v97
    %v243 = vpop.f32.mrb[0].mxu0
    %v244 = vadd.f32 0.0, %v243
    %v245 = vpop.f32.mrb[0].mxu0
    %246 = vmatprep.mubr.f32.mxu0 0.0
    %247 = vmatmul.mubr.f32.gmra.mrb[0].mxu0 %v98
    %v248 = vpop.f32.mrb[0].mxu0
    %v249 = vadd.f32 0.0, %v248
    %v250 = vpop.f32.mrb[0].mxu0
    %251 = vmatprep.mubr.f32.mxu0 0.0
    %252 = vmatmul.mubr.f32.gmra.mrb[0].mxu0 %v99
    %v253 = vpop.f32.mrb[0].mxu0
    %v254 = vadd.f32 0.0, %v253
    %v255 = vpop.f32.mrb[0].mxu0
    %256 = vmatprep.mubr.f32.mxu0 0.0
    %257 = vmatmul.mubr.f32.gmra.mrb[0].mxu0 %v100
    %v258 = vpop.f32.mrb[0].mxu0
    %v259 = vadd.f32 0.0, %v258
    %v260 = vpop.f32.mrb[0].mxu0
    %261 = vdwg.mxu0
    %v262 = vadd.f32 %v69, %v184
    %v263 = vadd.f32 %v70, %v189
    %v264 = vadd.f32 %v71, %v194
    %v265 = vadd.f32 %v72, %v199
    %v266 = vadd.f32 %v73, %v204
    %v267 = vadd.f32 %v74, %v209
    %v268 = vadd.f32 %v75, %v214
    %v269 = vadd.f32 %v76, %v219
    %v270 = vadd.f32 %v77, %v224
    %v271 = vadd.f32 %v78, %v229
    %v272 = vadd.f32 %v79, %v234
    %v273 = vadd.f32 %v80, %v239
    %v274 = vadd.f32 %v81, %v244
    %v275 = vadd.f32 %v82, %v249
    %v276 = vadd.f32 %v83, %v254
    %v277 = vadd.f32 %v84, %v259
    %278 = vst [vmem:[#allocation2] sm:$0xff] %v262
    %279 = vst [vmem:[#allocation2 + $0x8] sm:$0xff] %v263
    %280 = vst [vmem:[#allocation2 + $0x10] sm:$0xff] %v264
    %281 = vst [vmem:[#allocation2 + $0x18] sm:$0xff] %v265
    %282 = vst [vmem:[#allocation2 + $0x20] sm:$0xff] %v266
    %283 = vst [vmem:[#allocation2 + $0x28] sm:$0xff] %v267
    %284 = vst [vmem:[#allocation2 + $0x30] sm:$0xff] %v268
    %285 = vst [vmem:[#allocation2 + $0x38] sm:$0xff] %v269
    %286 = vst [vmem:[#allocation2 + $0x40] sm:$0xff] %v270
    %287 = vst [vmem:[#allocation2 + $0x48] sm:$0xff] %v271
    %288 = vst [vmem:[#allocation2 + $0x50] sm:$0xff] %v272
    %289 = vst [vmem:[#allocation2 + $0x58] sm:$0xff] %v273
    %290 = vst [vmem:[#allocation2 + $0x60] sm:$0xff] %v274
    %291 = vst [vmem:[#allocation2 + $0x68] sm:$0xff] %v275
    %292 = vst [vmem:[#allocation2 + $0x70] sm:$0xff] %v276
    %293 = vst [vmem:[#allocation2 + $0x78] sm:$0xff] %v277
    // Predicated region
    $region34: #{tpu_custom_call.1} parent=1 // pred_check
      %p294 = pneg %p49
    $region35: #{tpu_custom_call.1} parent=1 // pred_check_branch
      %296 = sbr.rel (%p294) target = $region37
    $region36: #{tpu_custom_call.1} parent=1 // pred_region
      %v297 = vld [vmem:[#allocation2] sm:$0xff]
      %v298 = vld [vmem:[#allocation2 + $0x8] sm:$0xff]
      %v299 = vld [vmem:[#allocation2 + $0x10] sm:$0xff]
      %v300 = vld [vmem:[#allocation2 + $0x18] sm:$0xff]
      %v301 = vld [vmem:[#allocation2 + $0x20] sm:$0xff]
      %v302 = vld [vmem:[#allocation2 + $0x28] sm:$0xff]
      %v303 = vld [vmem:[#allocation2 + $0x30] sm:$0xff]
      %v304 = vld [vmem:[#allocation2 + $0x38] sm:$0xff]
      %v305 = vld [vmem:[#allocation2 + $0x40] sm:$0xff]
      %v306 = vld [vmem:[#allocation2 + $0x48] sm:$0xff]
      %v307 = vld [vmem:[#allocation2 + $0x50] sm:$0xff]
      %v308 = vld [vmem:[#allocation2 + $0x58] sm:$0xff]
      %v309 = vld [vmem:[#allocation2 + $0x60] sm:$0xff]
      %v310 = vld [vmem:[#allocation2 + $0x68] sm:$0xff]
      %v311 = vld [vmem:[#allocation2 + $0x70] sm:$0xff]
      %v312 = vld [vmem:[#allocation2 + $0x78] sm:$0xff]
      %v313 = vld [vmem:[#allocation6] sm:$0xff]
      %v314 = vld [vmem:[#allocation6 + $0x8] sm:$0xff]
      %v315 = vld [vmem:[#allocation6 + $0x10] sm:$0xff]
      %v316 = vld [vmem:[#allocation6 + $0x18] sm:$0xff]
      %v317 = vld [vmem:[#allocation6 + $0x20] sm:$0xff]
      %v318 = vld [vmem:[#allocation6 + $0x28] sm:$0xff]
      %v319 = vld [vmem:[#allocation6 + $0x30] sm:$0xff]
      %v320 = vld [vmem:[#allocation6 + $0x38] sm:$0xff]
      %v321 = vld [vmem:[#allocation6 + $0x40] sm:$0xff]
      %v322 = vld [vmem:[#allocation6 + $0x48] sm:$0xff]
      %v323 = vld [vmem:[#allocation6 + $0x50] sm:$0xff]
      %v324 = vld [vmem:[#allocation6 + $0x58] sm:$0xff]
      %v325 = vld [vmem:[#allocation6 + $0x60] sm:$0xff]
      %v326 = vld [vmem:[#allocation6 + $0x68] sm:$0xff]
      %v327 = vld [vmem:[#allocation6 + $0x70] sm:$0xff]
      %v328 = vld [vmem:[#allocation6 + $0x78] sm:$0xff]
      %329 = vmatprep.subr.mxu0 0.0
      %330 = vmatpush1.msra.mxu0 %v313
      %331 = vmatprep.subr.mxu0 0.0
      %332 = vmatpush1.msra.mxu0 %v314
      %333 = vmatprep.subr.mxu0 0.0
      %334 = vmatpush1.msra.mxu0 %v315
      %335 = vmatprep.subr.mxu0 0.0
      %336 = vmatpush1.msra.mxu0 %v316
      %337 = vmatprep.subr.mxu0 0.0
      %338 = vmatpush1.msra.mxu0 %v317
      %339 = vmatprep.subr.mxu0 0.0
      %340 = vmatpush1.msra.mxu0 %v318
      %341 = vmatprep.subr.mxu0 0.0
      %342 = vmatpush1.msra.mxu0 %v319
      %343 = vmatprep.subr.mxu0 0.0
      %344 = vmatpush1.msra.mxu0 %v320
      %345 = vmatprep.subr.mxu0 0.0
      %346 = vmatpush1.msra.mxu0 %v321
      %347 = vmatprep.subr.mxu0 0.0
      %348 = vmatpush1.msra.mxu0 %v322
      %349 = vmatprep.subr.mxu0 0.0
      %350 = vmatpush1.msra.mxu0 %v323
      %351 = vmatprep.subr.mxu0 0.0
      %352 = vmatpush1.msra.mxu0 %v324
      %353 = vmatprep.subr.mxu0 0.0
      %354 = vmatpush1.msra.mxu0 %v325
      %355 = vmatprep.subr.mxu0 0.0
      %356 = vmatpush1.msra.mxu0 %v326
      %357 = vmatprep.subr.mxu0 0.0
      %358 = vmatpush1.msra.mxu0 %v327
      %359 = vmatprep.subr.mxu0 0.0
      %360 = vmatpush1.msra.mxu0 %v328
      %361 = vmatprep.subr.mxu0 0.0
      %362 = vmatpush1.msra.mxu0 0.0
      %363 = vmatprep.subr.mxu0 0.0
      %364 = vmatpush1.msra.mxu0 0.0
      %365 = vmatprep.subr.mxu0 0.0
      %366 = vmatpush1.msra.mxu0 0.0
      %367 = vmatprep.subr.mxu0 0.0
      %368 = vmatpush1.msra.mxu0 0.0
      %369 = vmatprep.subr.mxu0 0.0
      %370 = vmatpush1.msra.mxu0 0.0
      %371 = vmatprep.subr.mxu0 0.0
      %372 = vmatpush1.msra.mxu0 0.0
      %373 = vmatprep.subr.mxu0 0.0
      %374 = vmatpush1.msra.mxu0 0.0
      %375 = vmatprep.subr.mxu0 0.0
      %376 = vmatpush1.msra.mxu0 0.0
      %377 = vmatprep.subr.mxu0 0.0
      %378 = vmatpush1.msra.mxu0 0.0
      %379 = vmatprep.subr.mxu0 0.0
      %380 = vmatpush1.msra.mxu0 0.0
      %381 = vmatprep.subr.mxu0 0.0
      %382 = vmatpush1.msra.mxu0 0.0
      %383 = vmatprep.subr.mxu0 0.0
      %384 = vmatpush1.msra.mxu0 0.0
      %385 = vmatprep.subr.mxu0 0.0
      %386 = vmatpush1.msra.mxu0 0.0
      %387 = vmatprep.subr.mxu0 0.0
      %388 = vmatpush1.msra.mxu0 0.0
      %389 = vmatprep.subr.mxu0 0.0
      %390 = vmatpush1.msra.mxu0 0.0
      %391 = vmatprep.subr.mxu0 0.0
      %392 = vmatpush1.msra.mxu0 0.0
      %393 = vmatprep.mubr.f32.mxu0 0.0
      %394 = vmatmul.mubr.f32.gmra.mrb[0].mxu0 %v297
      %v395 = vpop.f32.mrb[0].mxu0
      %v396 = vadd.f32 0.0, %v395
      %v397 = vpop.f32.mrb[0].mxu0
      %398 = vmatprep.mubr.f32.mxu0 0.0
      %399 = vmatmul.mubr.f32.gmra.mrb[0].mxu0 %v298
      %v400 = vpop.f32.mrb[0].mxu0
      %v401 = vadd.f32 0.0, %v400
      %v402 = vpop.f32.mrb[0].mxu0
      %403 = vmatprep.mubr.f32.mxu0 0.0
      %404 = vmatmul.mubr.f32.gmra.mrb[0].mxu0 %v299
      %v405 = vpop.f32.mrb[0].mxu0
      %v406 = vadd.f32 0.0, %v405
      %v407 = vpop.f32.mrb[0].mxu0
      %408 = vmatprep.mubr.f32.mxu0 0.0
      %409 = vmatmul.mubr.f32.gmra.mrb[0].mxu0 %v300
      %v410 = vpop.f32.mrb[0].mxu0
      %v411 = vadd.f32 0.0, %v410
      %v412 = vpop.f32.mrb[0].mxu0
      %413 = vmatprep.mubr.f32.mxu0 0.0
      %414 = vmatmul.mubr.f32.gmra.mrb[0].mxu0 %v301
      %v415 = vpop.f32.mrb[0].mxu0
      %v416 = vadd.f32 0.0, %v415
      %v417 = vpop.f32.mrb[0].mxu0
      %418 = vmatprep.mubr.f32.mxu0 0.0
      %419 = vmatmul.mubr.f32.gmra.mrb[0].mxu0 %v302
      %v420 = vpop.f32.mrb[0].mxu0
      %v421 = vadd.f32 0.0, %v420
      %v422 = vpop.f32.mrb[0].mxu0
      %423 = vmatprep.mubr.f32.mxu0 0.0
      %424 = vmatmul.mubr.f32.gmra.mrb[0].mxu0 %v303
      %v425 = vpop.f32.mrb[0].mxu0
      %v426 = vadd.f32 0.0, %v425
      %v427 = vpop.f32.mrb[0].mxu0
      %428 = vmatprep.mubr.f32.mxu0 0.0
      %429 = vmatmul.mubr.f32.gmra.mrb[0].mxu0 %v304
      %v430 = vpop.f32.mrb[0].mxu0
      %v431 = vadd.f32 0.0, %v430
      %v432 = vpop.f32.mrb[0].mxu0
      %433 = vmatprep.mubr.f32.mxu0 0.0
      %434 = vmatmul.mubr.f32.gmra.mrb[0].mxu0 %v305
      %v435 = vpop.f32.mrb[0].mxu0
      %v436 = vadd.f32 0.0, %v435
      %v437 = vpop.f32.mrb[0].mxu0
      %438 = vmatprep.mubr.f32.mxu0 0.0
      %439 = vmatmul.mubr.f32.gmra.mrb[0].mxu0 %v306
      %v440 = vpop.f32.mrb[0].mxu0
      %v441 = vadd.f32 0.0, %v440
      %v442 = vpop.f32.mrb[0].mxu0
      %443 = vmatprep.mubr.f32.mxu0 0.0
      %444 = vmatmul.mubr.f32.gmra.mrb[0].mxu0 %v307
      %v445 = vpop.f32.mrb[0].mxu0
      %v446 = vadd.f32 0.0, %v445
      %v447 = vpop.f32.mrb[0].mxu0
      %448 = vmatprep.mubr.f32.mxu0 0.0
      %449 = vmatmul.mubr.f32.gmra.mrb[0].mxu0 %v308
      %v450 = vpop.f32.mrb[0].mxu0
      %v451 = vadd.f32 0.0, %v450
      %v452 = vpop.f32.mrb[0].mxu0
      %453 = vmatprep.mubr.f32.mxu0 0.0
      %454 = vmatmul.mubr.f32.gmra.mrb[0].mxu0 %v309
      %v455 = vpop.f32.mrb[0].mxu0
      %v456 = vadd.f32 0.0, %v455
      %v457 = vpop.f32.mrb[0].mxu0
      %458 = vmatprep.mubr.f32.mxu0 0.0
      %459 = vmatmul.mubr.f32.gmra.mrb[0].mxu0 %v310
      %v460 = vpop.f32.mrb[0].mxu0
      %v461 = vadd.f32 0.0, %v460
      %v462 = vpop.f32.mrb[0].mxu0
      %463 = vmatprep.mubr.f32.mxu0 0.0
      %464 = vmatmul.mubr.f32.gmra.mrb[0].mxu0 %v311
      %v465 = vpop.f32.mrb[0].mxu0
      %v466 = vadd.f32 0.0, %v465
      %v467 = vpop.f32.mrb[0].mxu0
      %468 = vmatprep.mubr.f32.mxu0 0.0
      %469 = vmatmul.mubr.f32.gmra.mrb[0].mxu0 %v312
      %v470 = vpop.f32.mrb[0].mxu0
      %v471 = vadd.f32 0.0, %v470
      %v472 = vpop.f32.mrb[0].mxu0
      %473 = vdwg.mxu0
      %v474 = vld [vmem:[%s3] sm:$0xff]
      %v475 = vld [vmem:[%s3 + $0x8] sm:$0xff]
      %v476 = vld [vmem:[%s3 + $0x10] sm:$0xff]
      %v477 = vld [vmem:[%s3 + $0x18] sm:$0xff]
      %v478 = vld [vmem:[%s3 + $0x20] sm:$0xff]
      %v479 = vld [vmem:[%s3 + $0x28] sm:$0xff]
      %v480 = vld [vmem:[%s3 + $0x30] sm:$0xff]
      %v481 = vld [vmem:[%s3 + $0x38] sm:$0xff]
      %v482 = vld [vmem:[%s3 + $0x40] sm:$0xff]
      %v483 = vld [vmem:[%s3 + $0x48] sm:$0xff]
      %v484 = vld [vmem:[%s3 + $0x50] sm:$0xff]
      %v485 = vld [vmem:[%s3 + $0x58] sm:$0xff]
      %v486 = vld [vmem:[%s3 + $0x60] sm:$0xff]
      %v487 = vld [vmem:[%s3 + $0x68] sm:$0xff]
      %v488 = vld [vmem:[%s3 + $0x70] sm:$0xff]
      %v489 = vld [vmem:[%s3 + $0x78] sm:$0xff]
      %491 = vset.pattern.permute.xlu0 0
      %492 = vperm.xlu0 %491, %v474
      %v493 = vpop.permute.xlu0 %492
      %496 = vset.pattern.permute.xlu0 0
      %497 = vperm.xlu0 %496, %v475
      %v498 = vpop.permute.xlu0 %497
      %501 = vset.pattern.permute.xlu0 0
      %502 = vperm.xlu0 %501, %v476
      %v503 = vpop.permute.xlu0 %502
      %506 = vset.pattern.permute.xlu0 0
      %507 = vperm.xlu0 %506, %v477
      %v508 = vpop.permute.xlu0 %507
      %511 = vset.pattern.permute.xlu0 0
      %512 = vperm.xlu0 %511, %v478
      %v513 = vpop.permute.xlu0 %512
      %516 = vset.pattern.permute.xlu0 0
      %517 = vperm.xlu0 %516, %v479
      %v518 = vpop.permute.xlu0 %517
      %521 = vset.pattern.permute.xlu0 0
      %522 = vperm.xlu0 %521, %v480
      %v523 = vpop.permute.xlu0 %522
      %526 = vset.pattern.permute.xlu0 0
      %527 = vperm.xlu0 %526, %v481
      %v528 = vpop.permute.xlu0 %527
      %531 = vset.pattern.permute.xlu0 0
      %532 = vperm.xlu0 %531, %v482
      %v533 = vpop.permute.xlu0 %532
      %536 = vset.pattern.permute.xlu0 0
      %537 = vperm.xlu0 %536, %v483
      %v538 = vpop.permute.xlu0 %537
      %541 = vset.pattern.permute.xlu0 0
      %542 = vperm.xlu0 %541, %v484
      %v543 = vpop.permute.xlu0 %542
      %546 = vset.pattern.permute.xlu0 0
      %547 = vperm.xlu0 %546, %v485
      %v548 = vpop.permute.xlu0 %547
      %551 = vset.pattern.permute.xlu0 0
      %552 = vperm.xlu0 %551, %v486
      %v553 = vpop.permute.xlu0 %552
      %556 = vset.pattern.permute.xlu0 0
      %557 = vperm.xlu0 %556, %v487
      %v558 = vpop.permute.xlu0 %557
      %561 = vset.pattern.permute.xlu0 0
      %562 = vperm.xlu0 %561, %v488
      %v563 = vpop.permute.xlu0 %562
      %566 = vset.pattern.permute.xlu0 0
      %567 = vperm.xlu0 %566, %v489
      %v568 = vpop.permute.xlu0 %567
      %v570 = vmul.f32 %v396, %v493
      %v571 = vmul.f32 %v401, %v498
      %v572 = vmul.f32 %v406, %v503
      %v573 = vmul.f32 %v411, %v508
      %v574 = vmul.f32 %v416, %v513
      %v575 = vmul.f32 %v421, %v518
      %v576 = vmul.f32 %v426, %v523
      %v577 = vmul.f32 %v431, %v528
      %v578 = vmul.f32 %v436, %v533
      %v579 = vmul.f32 %v441, %v538
      %v580 = vmul.f32 %v446, %v543
      %v581 = vmul.f32 %v451, %v548
      %v582 = vmul.f32 %v456, %v553
      %v583 = vmul.f32 %v461, %v558
      %v584 = vmul.f32 %v466, %v563
      %v585 = vmul.f32 %v471, %v568
      %v586 = vld [vmem:[%s4] sm:$0x1]
      %v588 = vlaneseq
      %v589 = vshrl.u32 %v588, 7
      %v590 = vsub.s32 0, %v589
      %v591 = vrot.slane %v586, %v590
      %v593 = vadd.f32 %v570, %v591
      %v594 = vadd.f32 %v571, %v591
      %v595 = vadd.f32 %v572, %v591
      %v596 = vadd.f32 %v573, %v591
      %v597 = vadd.f32 %v574, %v591
      %v598 = vadd.f32 %v575, %v591
      %v599 = vadd.f32 %v576, %v591
      %v600 = vadd.f32 %v577, %v591
      %v601 = vadd.f32 %v578, %v591
      %v602 = vadd.f32 %v579, %v591
      %v603 = vadd.f32 %v580, %v591
      %v604 = vadd.f32 %v581, %v591
      %v605 = vadd.f32 %v582, %v591
      %v606 = vadd.f32 %v583, %v591
      %v607 = vadd.f32 %v584, %v591
      %v608 = vadd.f32 %v585, %v591
      %v609 = vmax.f32 %v593, 0.0
      %v610 = vmax.f32 %v594, 0.0
      %v611 = vmax.f32 %v595, 0.0
      %v612 = vmax.f32 %v596, 0.0
      %v613 = vmax.f32 %v597, 0.0
      %v614 = vmax.f32 %v598, 0.0
      %v615 = vmax.f32 %v599, 0.0
      %v616 = vmax.f32 %v600, 0.0
      %v617 = vmax.f32 %v601, 0.0
      %v618 = vmax.f32 %v602, 0.0
      %v619 = vmax.f32 %v603, 0.0
      %v620 = vmax.f32 %v604, 0.0
      %v621 = vmax.f32 %v605, 0.0
      %v622 = vmax.f32 %v606, 0.0
      %v623 = vmax.f32 %v607, 0.0
      %v624 = vmax.f32 %v608, 0.0
      %625 = vst [vmem:[#allocation8] sm:$0xff] %v609
      %626 = vst [vmem:[#allocation8 + $0x8] sm:$0xff] %v610
      %627 = vst [vmem:[#allocation8 + $0x10] sm:$0xff] %v611
      %628 = vst [vmem:[#allocation8 + $0x18] sm:$0xff] %v612
      %629 = vst [vmem:[#allocation8 + $0x20] sm:$0xff] %v613
      %630 = vst [vmem:[#allocation8 + $0x28] sm:$0xff] %v614
      %631 = vst [vmem:[#allocation8 + $0x30] sm:$0xff] %v615
      %632 = vst [vmem:[#allocation8 + $0x38] sm:$0xff] %v616
      %633 = vst [vmem:[#allocation8 + $0x40] sm:$0xff] %v617
      %634 = vst [vmem:[#allocation8 + $0x48] sm:$0xff] %v618
      %635 = vst [vmem:[#allocation8 + $0x50] sm:$0xff] %v619
      %636 = vst [vmem:[#allocation8 + $0x58] sm:$0xff] %v620
      %637 = vst [vmem:[#allocation8 + $0x60] sm:$0xff] %v621
      %638 = vst [vmem:[#allocation8 + $0x68] sm:$0xff] %v622
      %639 = vst [vmem:[#allocation8 + $0x70] sm:$0xff] %v623
      %640 = vst [vmem:[#allocation8 + $0x78] sm:$0xff] %v624
    $region37: #{tpu_custom_call.1} parent=1 // pred_fallthru
      _
    // Predicated region
    $region38: #{tpu_custom_call.1} parent=1 // pred_check
      _
    $region39: #{tpu_custom_call.1} parent=1 // pred_check_branch
      %642 = sbr.rel (0) target = $region41
    $region40: #{tpu_custom_call.1} parent=1 // pred_region
      %s644 = ssub.s32 2048, 2048
      %645 = vsyncadd [#allocation5], %s644
      %s646 = sshll.u32 [#allocation8], 4
      %s647 = int_to_ptr.vmem [resolvable:$true] %s646
      %652 = dma.vmem_to_hbm [thread:$0]  %s647, 2048, %s5, [#allocation5], 128, 128, 8
    $region41: #{tpu_custom_call.1} parent=1 // pred_fallthru
      _
    // Predicated region
    $region42: #{tpu_custom_call.1} parent=1 // pred_check
      _
    $region43: #{tpu_custom_call.1} parent=1 // pred_check_branch
      %654 = sbr.rel (0) target = $region45
    $region44: #{tpu_custom_call.1} parent=1 // pred_region
      %655 = dma.done [#allocation5], 2048
    $region45: #{tpu_custom_call.1} parent=1 // pred_fallthru
      _
    %656 = vsyncpa [#allocation4], 1
    %657 = vsyncpa [#allocation7], 1
    %658 = vsyncpa [#allocation5], 1

</llo_original>
